<compile_context>
chip_gen: v6e
topology: v6e:2x2x1
jax: 0.10.0
libtpu: 0.0.40
codegen_flags: <defaults>
</compile_context>

<pallas_src>
import math
from functools import partial

import jax
import jax.numpy as jnp
import numpy as np
from jax.experimental import pallas as pl
from jax.experimental.pallas import tpu as pltpu

KB = 8.617333262e-5          # Boltzmann constant (eV / K) used by the Temperature handler
LANES = 128
SUBLANES = 8
MAX_TILE_ROWS = 2048         # streaming tile: (3, 2048, 128) f32 v-block = 3 MiB
_STREAM_VMEM_LIMIT = 32 * 1024 * 1024

_VMEM_CAP = None             # lazily-queried physical VMEM capacity


def _cdiv(a, b):
    return -(-a // b)


def _round_up(x, m):
    return ((x + m - 1) // m) * m


def _vmem_cap():
    """Physical VMEM bytes (v5e/v6e: 128 MiB, v7x: 64 MiB); conservative fallback."""
    global _VMEM_CAP
    if _VMEM_CAP is None:
        cap = 0
        try:
            info = pltpu.get_tpu_info()
            cap = int(getattr(info, "vmem_capacity_bytes", 0))
        except Exception:
            cap = 0
        _VMEM_CAP = cap if cap > 0 else 64 * 1024 * 1024
    return _VMEM_CAP


def _layout(n_atoms, force_streaming=False, tile_rows=MAX_TILE_ROWS):
    """Static plan: slab rows, tiling and which path to take."""
    rows_min = _round_up(max(_cdiv(n_atoms, LANES), 1), SUBLANES)
    cap = _vmem_cap()
    # rough fused-path VMEM estimate: v in/out + m (assume double-buffered) + temps
    est = 18 * rows_min * LANES * 4
    if not force_streaming and est <= int(cap * 0.6):
        return dict(fused=True, rows=rows_min, tile=rows_min, tiles=1,
                    vmem_limit=int(cap * 0.75))
    # streaming: pick the tile COUNT first (even -> 2-way core split on v7x),
    # then the tile size, so padding is at most ~8 rows per tile.
    tiles = _round_up(max(_cdiv(rows_min, tile_rows), 2), 2)
    tile = _round_up(_cdiv(rows_min, tiles), SUBLANES)
    return dict(fused=False, rows=tiles * tile, tile=tile, tiles=tiles,
                vmem_limit=_STREAM_VMEM_LIMIT)


# --------------------------------------------------------------------------- #
# Slab <-> (N,3) conversion glue.  In an MD loop keep (v_slab, m_slab)
# persistent across steps and feed _csvr_apply_slabs directly.
# --------------------------------------------------------------------------- #
def _make_slabs(velocities, masses, rows):
    n = velocities.shape[0]
    pad = rows * LANES - n
    v_cm = velocities.astype(jnp.float32).T                         # (3, N) component-major
    v_slab = jnp.pad(v_cm, ((0, 0), (0, pad))).reshape(3, rows, LANES)
    m_flat = masses.astype(jnp.float32).reshape(-1)
    m_slab = jnp.pad(m_flat, (0, pad)).reshape(rows, LANES)
    return v_slab, m_slab


def _slab_to_velocities(v_slab, n):
    return v_slab.reshape(3, -1)[:, :n].T


# --------------------------------------------------------------------------- #
# Fused path: one kernel, slabs resident in VMEM.
# --------------------------------------------------------------------------- #
def _fused_kernel(s_ref, v_ref, m_ref, vout_ref, alpha_ref):
    # s_ref (SMEM f32[5]): [c1, c2_pref=(1-c1)*e_kin_target/n_dofs, 0.5*conv_fac,
    #                       r1*r1 + r2, 2*r1]
    v0 = v_ref[0]                                                   # (R, 128)
    v1 = v_ref[1]
    v2 = v_ref[2]
    part = m_ref[...] * (v0 * v0 + v1 * v1 + v2 * v2)               # (R, 128)
    # row-group VALU adds down to one (8,128) vreg, then a small XLU reduce
    acc8 = jnp.sum(part.reshape(-1, SUBLANES, LANES), axis=0)       # (8, 128)
    e_kin = jnp.sum(acc8, keepdims=True) * s_ref[2]                 # (1, 1)

    c1 = s_ref[0]
    c2 = s_ref[1] / e_kin                                           # (1, 1)
    alpha = jnp.sqrt(c1 + c2 * s_ref[3] + s_ref[4] * jnp.sqrt(c1 * c2))
    alpha_ref[...] = alpha

    scale = jnp.broadcast_to(alpha, part.shape)                     # hoisted broadcast
    vout_ref[0] = v0 * scale
    vout_ref[1] = v1 * scale
    vout_ref[2] = v2 * scale


# --------------------------------------------------------------------------- #
# Streaming path, pass 1: pure kinetic-energy reduction.
# grid = (2, tiles//2): "parallel" split (both v7x TensorCores) x "arbitrary"
# reduction; accumulator is a lane/sublane-dense (8,128) output block per split.
# --------------------------------------------------------------------------- #
def _ke_kernel(v_ref, m_ref, out_ref):
    @pl.when(pl.program_id(1) == 0)
    def _():
        out_ref[...] = jnp.zeros_like(out_ref)

    v0 = v_ref[0]                                                   # (tile, 128)
    v1 = v_ref[1]
    v2 = v_ref[2]
    part = m_ref[...] * (v0 * v0 + v1 * v1 + v2 * v2)
    out_ref[...] += jnp.sum(part.reshape(-1, SUBLANES, LANES), axis=0)


# --------------------------------------------------------------------------- #
# Streaming path, pass 2: in-place velocity rescale (alpha from SMEM).
# --------------------------------------------------------------------------- #
def _scale_kernel(alpha_ref, v_ref, vout_ref):
    vout_ref[...] = v_ref[...] * alpha_ref[0]


# --------------------------------------------------------------------------- #
# Apply the thermostat on slabs.
# --------------------------------------------------------------------------- #
def _csvr_apply_slabs(scalars, v_slab, m_slab, plan):
    rows, tile, tiles = plan["rows"], plan["tile"], plan["tiles"]
    vmem_limit = plan["vmem_limit"]

    if plan["fused"]:
        new_slab, alpha = pl.pallas_call(
            _fused_kernel,
            out_shape=(jax.ShapeDtypeStruct((3, rows, LANES), jnp.float32),
                       jax.ShapeDtypeStruct((1, 1), jnp.float32)),
            in_specs=[
                pl.BlockSpec(memory_space=pltpu.MemorySpace.SMEM),      # scalars
                pl.BlockSpec(memory_space=pltpu.MemorySpace.VMEM),      # velocities
                pl.BlockSpec(memory_space=pltpu.MemorySpace.VMEM),      # masses
            ],
            out_specs=(pl.BlockSpec(memory_space=pltpu.MemorySpace.VMEM),
                       pl.BlockSpec(memory_space=pltpu.MemorySpace.VMEM)),
            input_output_aliases={1: 0},                                # in-place rescale
            compiler_params=pltpu.CompilerParams(vmem_limit_bytes=vmem_limit),
        )(scalars, v_slab, m_slab)
        return new_slab, alpha.reshape(())

    # ---- pass 1: KE reduction (2-way core split on the parallel axis) ------
    tps = tiles // 2
    ke_parts = pl.pallas_call(
        _ke_kernel,
        out_shape=jax.ShapeDtypeStruct((2 * SUBLANES, LANES), jnp.float32),
        grid=(2, tps),
        in_specs=[
            pl.BlockSpec((3, tile, LANES), lambda c, i: (0, c * tps + i, 0)),
            pl.BlockSpec((tile, LANES), lambda c, i: (c * tps + i, 0)),
        ],
        out_specs=pl.BlockSpec((SUBLANES, LANES), lambda c, i: (c, 0)),
        compiler_params=pltpu.CompilerParams(
            dimension_semantics=("parallel", "arbitrary"),
            vmem_limit_bytes=vmem_limit),
    )(v_slab, m_slab)

    # scalar CSVR algebra: tiny fused XLA op (pass 1 stays a pure reduction)
    e_kin = jnp.sum(ke_parts) * scalars[2]
    c1 = scalars[0]
    c2 = scalars[1] / e_kin
    alpha = jnp.sqrt(c1 + c2 * scalars[3] + scalars[4] * jnp.sqrt(c1 * c2))

    # ---- pass 2: in-place rescale ("parallel" -> sharded across cores) -----
    new_slab = pl.pallas_call(
        _scale_kernel,
        out_shape=jax.ShapeDtypeStruct((3, rows, LANES), jnp.float32),
        grid=(tiles,),
        in_specs=[
            pl.BlockSpec(memory_space=pltpu.MemorySpace.SMEM),          # alpha
            pl.BlockSpec((3, tile, LANES), lambda i: (0, i, 0)),        # velocities
        ],
        out_specs=pl.BlockSpec((3, tile, LANES), lambda i: (0, i, 0)),
        input_output_aliases={1: 0},
        compiler_params=pltpu.CompilerParams(
            dimension_semantics=("parallel",),
            vmem_limit_bytes=vmem_limit),
    )(alpha.reshape(1), v_slab)
    return new_slab, alpha


# --------------------------------------------------------------------------- #
# Noise draws (plain-JAX glue mirroring torch.distributions usage).
# --------------------------------------------------------------------------- #
def _draw_sum_noises_from_gamma(key, n_dofs):
    """Mirrors CSVRThermostat._draw_sum_noises_from_gamma_dist."""
    n1 = n_dofs - 1
    if n1 == 0:
        return jnp.zeros((), jnp.float32)
    if n1 == 1:
        g = jax.random.normal(key, (), jnp.float32)
        return g * g
    if n1 % 2 == 0:
        return 2.0 * jax.random.gamma(key, (n_dofs - 1) / 2.0, dtype=jnp.float32)
    ka, kb = jax.random.split(key)
    rr = jax.random.normal(kb, (), jnp.float32)
    return 2.0 * jax.random.gamma(ka, (n_dofs - 2) / 2.0, dtype=jnp.float32) + rr * rr


# --------------------------------------------------------------------------- #
# Full forward pass (single jit: RNG + scalar algebra + slab glue + kernels).
# --------------------------------------------------------------------------- #
@partial(jax.jit, static_argnames=("target_temp", "timestep", "damping", "n_dofs",
                                   "conv_fac", "force_streaming", "tile_rows"))
def csvr_thermostat_forward(velocities, masses, key, *, target_temp, timestep,
                            damping, n_dofs, conv_fac, force_streaming=False,
                            tile_rows=MAX_TILE_ROWS):
    """Returns (rescaled_velocities (N,3), alpha scalar)."""
    n = velocities.shape[0]
    c1 = math.exp(-timestep / damping)
    e_kin_target = 0.5 * n_dofs * KB * target_temp          # Temperature.to_kinetic_energy
    c2_pref = (1.0 - c1) * e_kin_target / n_dofs            # folded scalar algebra
    half_conv = 0.5 * conv_fac

    # TODO(synk): normal/gamma noise draws have no Pallas equivalent; plain-JAX RNG.
    k1, k2 = jax.random.split(key)
    r1 = jax.random.normal(k1, (), jnp.float32)
    r2 = _draw_sum_noises_from_gamma(k2, n_dofs)

    scalars = jnp.stack([
        jnp.float32(c1),
        jnp.float32(c2_pref),
        jnp.float32(half_conv),
        (r1 * r1 + r2).astype(jnp.float32),
        (2.0 * r1).astype(jnp.float32),
    ])

    plan = _layout(n, force_streaming, tile_rows)
    v_slab, m_slab = _make_slabs(velocities, masses, plan["rows"])
    new_slab, alpha = _csvr_apply_slabs(scalars, v_slab, m_slab, plan)
    return _slab_to_velocities(new_slab, n), alpha


# --------------------------------------------------------------------------- #
# Self-test
# --------------------------------------------------------------------------- #
def _reference(velocities, masses, *, target_temp, timestep, damping,
               n_dofs, conv_fac, key):
    c1 = math.exp(-timestep / damping)
    e_kin_target = 0.5 * n_dofs * KB * target_temp
    k1, k2 = jax.random.split(key)
    r1 = jax.random.normal(k1, (), jnp.float32)
    r2 = _draw_sum_noises_from_gamma(k2, n_dofs)
    e_kin = 0.5 * jnp.sum(masses.reshape(-1, 1) * velocities * velocities) * conv_fac
    c2 = (1.0 - c1) * e_kin_target / e_kin / n_dofs
    alpha = jnp.sqrt(c1 + c2 * (r1 * r1 + r2) + 2.0 * r1 * jnp.sqrt(c1 * c2))
    return velocities * alpha, alpha


def _run_case(n_atoms, key, force_streaming=False, tile_rows=MAX_TILE_ROWS):
    k_vel, k_mass, k_noise = jax.random.split(key, 3)
    n_dofs = 3 * n_atoms
    cfg = dict(target_temp=300.0, timestep=0.5, damping=100.0,
               n_dofs=n_dofs, conv_fac=1.0)

    velocities = jax.random.normal(k_vel, (n_atoms, 3), jnp.float32) * 1e-2
    masses = 1.0 + jax.random.uniform(k_mass, (n_atoms, 1), jnp.float32) * 20.0

    new_vel, alpha = csvr_thermostat_forward(
        velocities, masses, k_noise,
        force_streaming=force_streaming, tile_rows=tile_rows, **cfg)
    jax.block_until_ready((new_vel, alpha))

    vel_ref, alpha_ref = _reference(velocities, masses, key=k_noise, **cfg)

    assert np.allclose(np.asarray(alpha), np.asarray(alpha_ref),
                       rtol=1e-5, atol=1e-6), (alpha, alpha_ref)
    assert np.allclose(np.asarray(new_vel), np.asarray(vel_ref),
                       rtol=1e-5, atol=1e-7)


if __name__ == "__main__":
    root = jax.random.PRNGKey(0)
    k_small, k_big, k_stream = jax.random.split(root, 3)

    # tiny case (fused, VMEM-resident single-kernel path)
    _run_case(64, k_small)
    # larger case, still fused (typical MD size)
    _run_case(50000, k_big)
    # exercise the streaming two-pass path (parallel split + multi-tile
    # reduction + tail padding) at a small shape by forcing tiny tiles
    _run_case(5000, k_stream, force_streaming=True, tile_rows=8)

    print("KERNEL_OK")
</pallas_src>

<mosaic_0001>
module attributes {stable_mosaic.version = 11 : i64} {
  func.func @_fused_kernel(%arg0: memref<5xf32, #tpu.memory_space<smem>>, %arg1: memref<3x8x128xf32, #tpu.memory_space<vmem>>, %arg2: memref<8x128xf32, #tpu.memory_space<vmem>>, %arg3: memref<3x8x128xf32, #tpu.memory_space<vmem>>, %arg4: memref<1x1xf32, #tpu.memory_space<vmem>>) attributes {dimension_semantics = [], scalar_prefetch = 0 : i64, scratch_operands = 0 : i64, tpu.core_type = #tpu.core_type<tc>} {
    %c0 = arith.constant 0 : index
    %c0_0 = arith.constant 0 : index
    %c0_1 = arith.constant 0 : index
    %0 = vector.load %arg1[%c0, %c0_0, %c0_1] : memref<3x8x128xf32, #tpu.memory_space<vmem>>, vector<1x8x128xf32>
    %1 = vector.shape_cast %0 : vector<1x8x128xf32> to vector<8x128xf32>
    %c1 = arith.constant 1 : index
    %c0_2 = arith.constant 0 : index
    %c0_3 = arith.constant 0 : index
    %2 = vector.load %arg1[%c1, %c0_2, %c0_3] : memref<3x8x128xf32, #tpu.memory_space<vmem>>, vector<1x8x128xf32>
    %3 = vector.shape_cast %2 : vector<1x8x128xf32> to vector<8x128xf32>
    %c2 = arith.constant 2 : index
    %c0_4 = arith.constant 0 : index
    %c0_5 = arith.constant 0 : index
    %4 = vector.load %arg1[%c2, %c0_4, %c0_5] : memref<3x8x128xf32, #tpu.memory_space<vmem>>, vector<1x8x128xf32>
    %5 = vector.shape_cast %4 : vector<1x8x128xf32> to vector<8x128xf32>
    %c0_6 = arith.constant 0 : index
    %c0_7 = arith.constant 0 : index
    %6 = vector.load %arg2[%c0_6, %c0_7] : memref<8x128xf32, #tpu.memory_space<vmem>>, vector<8x128xf32>
    %7 = arith.mulf %1, %1 : vector<8x128xf32>
    %8 = arith.mulf %3, %3 : vector<8x128xf32>
    %9 = arith.addf %7, %8 : vector<8x128xf32>
    %10 = arith.mulf %5, %5 : vector<8x128xf32>
    %11 = arith.addf %9, %10 : vector<8x128xf32>
    %12 = arith.mulf %6, %11 : vector<8x128xf32>
    %13 = vector.shape_cast %12 : vector<8x128xf32> to vector<1x8x128xf32>
    %cst = arith.constant dense<0.000000e+00> : vector<8x128xf32>
    %14 = vector.multi_reduction <add>, %13, %cst [0] : vector<1x8x128xf32> to vector<8x128xf32>
    %15 = vector.shape_cast %14 : vector<8x128xf32> to vector<1x8x128xf32>
    %cst_8 = arith.constant dense<0.000000e+00> : vector<1xf32>
    %16 = vector.multi_reduction <add>, %15, %cst_8 [1, 2] : vector<1x8x128xf32> to vector<1xf32>
    %17 = vector.shape_cast %16 : vector<1xf32> to vector<1x1x1xf32>
    %18 = vector.extract %17[0, 0, 0] : f32 from vector<1x1x1xf32>
    %19 = vector.broadcast %18 : f32 to vector<1x1xf32>
    %c2_9 = arith.constant 2 : index
    %20 = memref.load %arg0[%c2_9] : memref<5xf32, #tpu.memory_space<smem>>
    %21 = vector.broadcast %20 : f32 to vector<1x1xf32>
    %22 = arith.mulf %19, %21 : vector<1x1xf32>
    %c0_10 = arith.constant 0 : index
    %23 = memref.load %arg0[%c0_10] : memref<5xf32, #tpu.memory_space<smem>>
    %c1_11 = arith.constant 1 : index
    %24 = memref.load %arg0[%c1_11] : memref<5xf32, #tpu.memory_space<smem>>
    %25 = vector.broadcast %24 : f32 to vector<1x1xf32>
    %26 = arith.divf %25, %22 : vector<1x1xf32>
    %c3 = arith.constant 3 : index
    %27 = memref.load %arg0[%c3] : memref<5xf32, #tpu.memory_space<smem>>
    %28 = vector.broadcast %27 : f32 to vector<1x1xf32>
    %29 = arith.mulf %26, %28 : vector<1x1xf32>
    %30 = vector.broadcast %23 : f32 to vector<1x1xf32>
    %31 = arith.addf %30, %29 : vector<1x1xf32>
    %c4 = arith.constant 4 : index
    %32 = memref.load %arg0[%c4] : memref<5xf32, #tpu.memory_space<smem>>
    %33 = vector.broadcast %23 : f32 to vector<1x1xf32>
    %34 = arith.mulf %33, %26 : vector<1x1xf32>
    %35 = math.sqrt %34 : vector<1x1xf32>
    %36 = vector.broadcast %32 : f32 to vector<1x1xf32>
    %37 = arith.mulf %36, %35 : vector<1x1xf32>
    %38 = arith.addf %31, %37 : vector<1x1xf32>
    %39 = math.sqrt %38 : vector<1x1xf32>
    %c0_12 = arith.constant 0 : index
    %c0_13 = arith.constant 0 : index
    %40 = vector.load %arg4[%c0_12, %c0_13] : memref<1x1xf32, #tpu.memory_space<vmem>>, vector<1x1xf32>
    tpu.vector_store %arg4[%c0_12, %c0_13], %39 {strides = array<i32>} : memref<1x1xf32, #tpu.memory_space<vmem>>, vector<1x1xf32>,
    %41 = vector.shape_cast %39 : vector<1x1xf32> to vector<1x1xf32>
    %42 = vector.broadcast %41 : vector<1x1xf32> to vector<8x128xf32>
    %43 = arith.mulf %1, %42 : vector<8x128xf32>
    %c0_14 = arith.constant 0 : index
    %c0_15 = arith.constant 0 : index
    %c0_16 = arith.constant 0 : index
    %44 = vector.load %arg3[%c0_14, %c0_15, %c0_16] : memref<3x8x128xf32, #tpu.memory_space<vmem>>, vector<1x8x128xf32>
    %45 = vector.shape_cast %44 : vector<1x8x128xf32> to vector<8x128xf32>
    %46 = vector.shape_cast %43 : vector<8x128xf32> to vector<1x8x128xf32>
    tpu.vector_store %arg3[%c0_14, %c0_15, %c0_16], %46 {strides = array<i32>} : memref<3x8x128xf32, #tpu.memory_space<vmem>>, vector<1x8x128xf32>,
    %47 = arith.mulf %3, %42 : vector<8x128xf32>
    %c1_17 = arith.constant 1 : index
    %c0_18 = arith.constant 0 : index
    %c0_19 = arith.constant 0 : index
    %48 = vector.load %arg3[%c1_17, %c0_18, %c0_19] : memref<3x8x128xf32, #tpu.memory_space<vmem>>, vector<1x8x128xf32>
    %49 = vector.shape_cast %48 : vector<1x8x128xf32> to vector<8x128xf32>
    %50 = vector.shape_cast %47 : vector<8x128xf32> to vector<1x8x128xf32>
    tpu.vector_store %arg3[%c1_17, %c0_18, %c0_19], %50 {strides = array<i32>} : memref<3x8x128xf32, #tpu.memory_space<vmem>>, vector<1x8x128xf32>,
    %51 = arith.mulf %5, %42 : vector<8x128xf32>
    %c2_20 = arith.constant 2 : index
    %c0_21 = arith.constant 0 : index
    %c0_22 = arith.constant 0 : index
    %52 = vector.load %arg3[%c2_20, %c0_21, %c0_22] : memref<3x8x128xf32, #tpu.memory_space<vmem>>, vector<1x8x128xf32>
    %53 = vector.shape_cast %52 : vector<1x8x128xf32> to vector<8x128xf32>
    %54 = vector.shape_cast %51 : vector<8x128xf32> to vector<1x8x128xf32>
    tpu.vector_store %arg3[%c2_20, %c0_21, %c0_22], %54 {strides = array<i32>} : memref<3x8x128xf32, #tpu.memory_space<vmem>>, vector<1x8x128xf32>,
    return
  }
}

</mosaic_0001>

<llo_original>
// kernel: csvr_thermostat_forward.1
$region0: #{csvr_thermostat_forward.1}
  #allocation0 [shape = 'u32[]', space=smem, size = 0x4, offset = 0x4, fixed_abs, tag = 'smem constant byte address 0x4 - core index']
  #allocation1 [shape = 'u32[144,128]{1,0:T(1,128)}', space=vmem, size = 0x12000, scoped, tag = 'internal scratch']
  %s0 = inlined_call_operand.vmem [shape: f32[5], index: 0, kind: input, shape index: {}]
  %s1 = inlined_call_operand.vmem [shape: f32[3,8,128], index: 1, kind: input, shape index: {}, may-alias: {1,3}]
  %s2 = inlined_call_operand.vmem [shape: f32[8,128], index: 2, kind: input, shape index: {}]
  %s3 = inlined_call_operand.vmem [shape: f32[3,8,128], index: 3, kind: output, shape index: {0}, may-alias: {1,3}]
  %s4 = inlined_call_operand.hbm [shape: f32[1,1], index: 4, kind: output, shape index: {1}]
  %5 = xla_tuple %s3, %s4
  %s6 = sld [smem:[#allocation0]]
  $region34: #{csvr_thermostat_forward.1} parent=0
    _
  %s8 = ssub.s32 1, %s6
  %s9 = scalar_select 0, %s8, %s6
  $region1: #{csvr_thermostat_forward.1} parent=0
    #allocation2 [shape = 'u8[512]{0}', space=smem, size = 0x200, scoped, tag = 'input window, operand 0, single buffered']
    #allocation3 [shape = 's32[1]{0}', space=sflag, size = 0x4, scoped, tag = 'scoped memory for csvr_thermostat_forward.1']
    #allocation4 [shape = 's32[1]{0}', space=sflag, size = 0x4, scoped, tag = 'scoped memory for csvr_thermostat_forward.1']
    #allocation5 [shape = 'u8[512]{0}', space=vmem, size = 0x400, scoped, tag = 'output window, operand 1, single buffered']
    %10 = vsyncpa [#allocation4], 0
    %11 = vsyncpa [#allocation3], 0
    // Predicated region
    $region2: #{csvr_thermostat_forward.1} parent=1 // pred_check
      _
    $region3: #{csvr_thermostat_forward.1} parent=1 // pred_check_branch
      %13 = sbr.rel (0) target = $region5
    $region4: #{csvr_thermostat_forward.1} parent=1 // pred_region
      %s15 = ssub.s32 16, 16
      %16 = vsyncadd [#allocation4], %s15
      %s18 = sshll.u32 %s0, 4
      %s19 = int_to_ptr.vmem [resolvable:$true] %s18
      %21 = dma.vmem_to_smem %s19, 16, [#allocation2], [#allocation4]
    $region5: #{csvr_thermostat_forward.1} parent=1 // pred_fallthru
      _
    // Predicated region
    $region6: #{csvr_thermostat_forward.1} parent=1 // pred_check
      _
    $region7: #{csvr_thermostat_forward.1} parent=1 // pred_check_branch
      %23 = sbr.rel (0) target = $region9
    $region8: #{csvr_thermostat_forward.1} parent=1 // pred_region
      _
    $region9: #{csvr_thermostat_forward.1} parent=1 // pred_fallthru
      _
    // Predicated region
    $region10: #{csvr_thermostat_forward.1} parent=1 // pred_check
      _
    $region11: #{csvr_thermostat_forward.1} parent=1 // pred_check_branch
      %25 = sbr.rel (0) target = $region13
    $region12: #{csvr_thermostat_forward.1} parent=1 // pred_region
      _
    $region13: #{csvr_thermostat_forward.1} parent=1 // pred_fallthru
      _
    // Predicated region
    $region14: #{csvr_thermostat_forward.1} parent=1 // pred_check
      _
    $region15: #{csvr_thermostat_forward.1} parent=1 // pred_check_branch
      %27 = sbr.rel (0) target = $region17
    $region16: #{csvr_thermostat_forward.1} parent=1 // pred_region
      %28 = dma.done [#allocation4], 16
    $region17: #{csvr_thermostat_forward.1} parent=1 // pred_fallthru
      _
    %29 = sfence
    %v30 = vld [vmem:[%s1] sm:$0xff]
    %s31 = scalar_lea.vmem %s1, 8
    %v32 = vld [vmem:[%s31] sm:$0xff]
    %s33 = scalar_lea.vmem %s1, 16
    %v34 = vld [vmem:[%s33] sm:$0xff]
    %v35 = vld [vmem:[%s2] sm:$0xff]
    %v36 = vmul.f32 %v30, %v30
    %v37 = vmul.f32 %v32, %v32
    %v38 = vadd.f32 %v36, %v37
    %v39 = vmul.f32 %v34, %v34
    %v40 = vadd.f32 %v38, %v39
    %v41 = vmul.f32 %v35, %v40
    %v42 = vadd.f32 %v41, 0.0
    %43 = vadd.xlane.f32.xlu0 %v42
    %v44 = vpop.xlane.xlu0 %43
    %v45 = vrot.slane %v44, 4
    %v46 = vadd.f32 %v44, %v45
    %v47 = vrot.slane %v46, 2
    %v48 = vadd.f32 %v46, %v47
    %v49 = vrot.slane %v48, 1
    %v50 = vadd.f32 %v48, %v49
    %s51 = vtos %v50
    %v52 = vstv %s51
    %s53 = sld [smem:[#allocation2 + $0x2]]
    %v54 = vstv %s53
    %v55 = vmul.f32 %v52, %v54
    %s56 = sld [smem:[#allocation2]]
    %s57 = sld [smem:[#allocation2 + $0x1]]
    %v58 = vstv %s57
    %v59 = vrcp.pop %v55
    %v60 = vmul.f32 %v58, %v59
    %s61 = sld [smem:[#allocation2 + $0x3]]
    %v62 = vstv %s61
    %v63 = vmul.f32 %v60, %v62
    %v64 = vstv %s56
    %v65 = vadd.f32 %v64, %v63
    %s66 = sld [smem:[#allocation2 + $0x4]]
    %v67 = vmul.f32 %v64, %v60
    %v68 = vrsqrt.pop %v67
    %v69 = vmul.f32 %v67, %v68
    %vm70 = vcmp.eq.f32.partialorder %v67, inf
    %v71 = vsel %vm70, %v67, %v69
    %vm72 = vcmp.eq.f32.partialorder %v67, 0.0
    %v73 = vand.u32 %v67, 2147483648
    %v74 = vsel %vm72, %v73, %v71
    %v75 = vstv %s66
    %v76 = vmul.f32 %v75, %v74
    %v77 = vadd.f32 %v65, %v76
    %v78 = vrsqrt.pop %v77
    %v79 = vmul.f32 %v77, %v78
    %vm80 = vcmp.eq.f32.partialorder %v77, inf
    %v81 = vsel %vm80, %v77, %v79
    %vm82 = vcmp.eq.f32.partialorder %v77, 0.0
    %v83 = vand.u32 %v77, 2147483648
    %v84 = vsel %vm82, %v83, %v81
    %vm85 = vcmask 0
    %86 = vst.msk [vmem:[#allocation5] sm:$0x1] %vm85, %v84
    %v87 = vmul.f32 %v30, %v84
    %88 = vst [vmem:[%s3] sm:$0xff] %v87
    %v89 = vmul.f32 %v32, %v84
    %s90 = scalar_lea.vmem %s3, 8
    %91 = vst [vmem:[%s90] sm:$0xff] %v89
    %v92 = vmul.f32 %v34, %v84
    %s93 = scalar_lea.vmem %s3, 16
    %94 = vst [vmem:[%s93] sm:$0xff] %v92
    // Predicated region
    $region18: #{csvr_thermostat_forward.1} parent=1 // pred_check
      _
    $region19: #{csvr_thermostat_forward.1} parent=1 // pred_check_branch
      %96 = sbr.rel (0) target = $region21
    $region20: #{csvr_thermostat_forward.1} parent=1 // pred_region
      _
    $region21: #{csvr_thermostat_forward.1} parent=1 // pred_fallthru
      _
    // Predicated region
    $region22: #{csvr_thermostat_forward.1} parent=1 // pred_check
      _
    $region23: #{csvr_thermostat_forward.1} parent=1 // pred_check_branch
      %98 = sbr.rel (0) target = $region25
    $region24: #{csvr_thermostat_forward.1} parent=1 // pred_region
      %s100 = ssub.s32 16, 16
      %101 = vsyncadd [#allocation3], %s100
      %s103 = sshll.u32 [#allocation5], 4
      %s104 = int_to_ptr.vmem [resolvable:$true] %s103
      %106 = dma.vmem_to_hbm [thread:$0]  %s104, 16, %s4, [#allocation3]
    $region25: #{csvr_thermostat_forward.1} parent=1 // pred_fallthru
      _
    // Predicated region
    $region26: #{csvr_thermostat_forward.1} parent=1 // pred_check
      _
    $region27: #{csvr_thermostat_forward.1} parent=1 // pred_check_branch
      %108 = sbr.rel (0) target = $region29
    $region28: #{csvr_thermostat_forward.1} parent=1 // pred_region
      _
    $region29: #{csvr_thermostat_forward.1} parent=1 // pred_fallthru
      _
    // Predicated region
    $region30: #{csvr_thermostat_forward.1} parent=1 // pred_check
      _
    $region31: #{csvr_thermostat_forward.1} parent=1 // pred_check_branch
      %110 = sbr.rel (0) target = $region33
    $region32: #{csvr_thermostat_forward.1} parent=1 // pred_region
      %111 = dma.done [#allocation3], 16
    $region33: #{csvr_thermostat_forward.1} parent=1 // pred_fallthru
      _
    %112 = vsyncpa [#allocation3], 1
    %113 = vsyncpa [#allocation4], 1

</llo_original>
